<compile_context>
chip_gen: v5e
topology: v5e:2x2
jax: 0.10.0
libtpu: 0.0.40
codegen_flags: <defaults>
</compile_context>

<pallas_src>
import jax
import jax.numpy as jnp
from jax import lax
from jax.experimental import pallas as pl
from jax.experimental.pallas import tpu as pltpu


def _round_up(n, m):
    return (n + m - 1) // m * m


def _cdiv(a, b):
    return -(-a // b)


# ---------------------------------------------------------------------------
# Kernel 1 (prep): inv_norm = rsqrt(sum(x^2, axis=1)); cast x -> operand dtype
# ---------------------------------------------------------------------------
def _prep_kernel(x_ref, xop_ref, inv_ref):
    x = x_ref[...]                                          # (rows, Dp) f32
    # rsqrt runs on the EUP (its own VLIW slot); the reduce is VPU/XLU.
    inv_ref[...] = lax.rsqrt(jnp.sum(x * x, axis=1, keepdims=True))
    xop_ref[...] = x.astype(xop_ref.dtype)                  # cast is free on the store


def _pick_prep_rows(np_, dp, op_bytes, budget_bytes=10 << 20):
    """Largest row block (dividing Np) whose double-buffered in+out fit the budget."""
    per_row = dp * (4 + op_bytes) * 2 + 16
    for cand in (1024, 512, 256, 128, 64, 32, 16, 8):
        if np_ % cand == 0 and cand * per_row <= budget_bytes:
            return cand
    # TODO(synk): also tile the feature axis for extremely large D (>~100k cols).
    return 8


def _prep(xp, op_dtype):
    np_, dp = xp.shape
    op_bytes = jnp.dtype(op_dtype).itemsize
    rows = _pick_prep_rows(np_, dp, op_bytes)
    return pl.pallas_call(
        _prep_kernel,
        out_shape=(jax.ShapeDtypeStruct((np_, dp), op_dtype),
                   jax.ShapeDtypeStruct((np_, 1), jnp.float32)),
        grid=(np_ // rows,),
        in_specs=[pl.BlockSpec((rows, dp), lambda i: (i, 0))],
        out_specs=(pl.BlockSpec((rows, dp), lambda i: (i, 0)),
                   pl.BlockSpec((rows, 1), lambda i: (i, 0))),
        compiler_params=pltpu.CompilerParams(
            dimension_semantics=("parallel",),
            vmem_limit_bytes=32 * 1024 * 1024),
        cost_estimate=pl.CostEstimate(
            flops=2 * np_ * dp,
            transcendentals=np_,
            bytes_accessed=np_ * dp * (4 + op_bytes) + np_ * 4),
    )(xp)


# ---------------------------------------------------------------------------
# Kernel 2: upper-triangular Gram tiles, rank-1 inv-norm scaling, clamp at 1.0
# ---------------------------------------------------------------------------
def _gram_acc_kernel(ii_ref, jj_ref, a_ref, b_ref, inv_r_ref, inv_c_ref,
                     o_ref, acc_ref):
    k = pl.program_id(1)

    @pl.when(k == 0)
    def _init():
        acc_ref[...] = jnp.zeros_like(acc_ref)

    # Contract the shared feature axis of both (tile, tk) operands directly;
    # no transposed copy of x is ever materialized in HBM.
    acc_ref[...] += lax.dot_general(
        a_ref[...], b_ref[...],
        dimension_numbers=(((1,), (1,)), ((), ())),
        preferred_element_type=jnp.float32)

    @pl.when(k == pl.num_programs(1) - 1)
    def _finalize():
        # Fused normalization (rank-1 scaling) + upper clamp at 1.0.
        scaled = acc_ref[...] * inv_r_ref[...] * inv_c_ref[...]
        o_ref[...] = jnp.minimum(scaled, 1.0).astype(o_ref.dtype)


def _gram_single_kernel(ii_ref, jj_ref, a_ref, b_ref, inv_r_ref, inv_c_ref,
                        o_ref):
    # Specialization for a single K step: no accumulator scratch, no branches.
    dot = lax.dot_general(
        a_ref[...], b_ref[...],
        dimension_numbers=(((1,), (1,)), ((), ())),
        preferred_element_type=jnp.float32)
    scaled = dot * inv_r_ref[...] * inv_c_ref[...]
    o_ref[...] = jnp.minimum(scaled, 1.0).astype(o_ref.dtype)


def _pick_row_tile(n):
    """Output tile edge; prefer big MXU-native tiles, padding N up when cheap."""
    np128 = _round_up(n, 128)
    tile = 128
    for cand in (256, 512):
        # Pad N up to the larger tile when the extra zero rows cost <= ~12.5%.
        if _round_up(n, cand) - np128 <= np128 // 8:
            tile = cand
    return tile


def metric(x, *, operand_dtype=jnp.bfloat16, tm=None, tk=None):
    """Pallas TPU forward of `Metric`: x [N, D] f32 -> clamped cosine-sim [N, N]."""
    N, D = x.shape
    op_bytes = jnp.dtype(operand_dtype).itemsize

    if tm is None:
        tm = _pick_row_tile(N)
    Np = _round_up(N, tm)

    dp128 = _round_up(D, 128)
    if tk is None:
        # Fewest near-equal K chunks of <= 2048 (multiples of 128).
        nk = _cdiv(dp128, 2048)
        tk = _round_up(_cdiv(dp128, nk), 128)
    Dp = _round_up(dp128, tk)

    xp = x if (Np, Dp) == (N, D) else jnp.pad(x, ((0, Np - N), (0, Dp - D)))

    # Pass 1: inverse row norms + operand-dtype copy (xn is never materialized).
    xop, inv = _prep(xp, operand_dtype)
    inv_row = inv                     # (Np, 1): (tm, 1) tiles, row scaling
    inv_col = inv.T                   # (1, Np): (1, tm) tiles, column scaling

    # Upper-triangular (tile-level) work list, scalar-prefetched into SMEM.
    G = Np // tm
    pairs = [(i, j) for i in range(G) for j in range(i, G)]
    ii = jnp.asarray([p[0] for p in pairs], jnp.int32)
    jj = jnp.asarray([p[1] for p in pairs], jnp.int32)
    num_tri = len(pairs)
    Kt = Dp // tk

    if Kt == 1:
        kernel = _gram_single_kernel
        grid = (num_tri,)
        scratch = []
        dims = ("parallel",)

        def amap(t, ii, jj): return (ii[t], 0)
        def bmap(t, ii, jj): return (jj[t], 0)
        def rmap(t, ii, jj): return (ii[t], 0)
        def cmap(t, ii, jj): return (0, jj[t])
        def omap(t, ii, jj): return (ii[t], jj[t])
    else:
        kernel = _gram_acc_kernel
        grid = (num_tri, Kt)
        scratch = [pltpu.VMEM((tm, tm), jnp.float32)]
        dims = ("parallel", "arbitrary")

        def amap(t, k, ii, jj): return (ii[t], k)
        def bmap(t, k, ii, jj): return (jj[t], k)
        def rmap(t, k, ii, jj): return (ii[t], 0)
        def cmap(t, k, ii, jj): return (0, jj[t])
        def omap(t, k, ii, jj): return (ii[t], jj[t])

    up = pl.pallas_call(
        kernel,
        out_shape=jax.ShapeDtypeStruct((Np, Np), x.dtype),
        grid_spec=pltpu.PrefetchScalarGridSpec(
            num_scalar_prefetch=2,
            grid=grid,
            in_specs=[
                pl.BlockSpec((tm, tk), amap),
                pl.BlockSpec((tm, tk), bmap),
                pl.BlockSpec((tm, 1), rmap),
                pl.BlockSpec((1, tm), cmap),
            ],
            out_specs=pl.BlockSpec((tm, tm), omap),
            scratch_shapes=scratch,
        ),
        compiler_params=pltpu.CompilerParams(
            dimension_semantics=dims,
            vmem_limit_bytes=48 * 1024 * 1024),
        cost_estimate=pl.CostEstimate(
            flops=2 * num_tri * tm * tm * Dp,
            transcendentals=0,
            bytes_accessed=(num_tri * Kt * 2 * tm * tk * op_bytes
                            + num_tri * (tm * tm * 4 + 2 * tm * 4))),
    )(ii, jj, xop, xop, inv_row, inv_col)

    up = up[:N, :N]
    if G > 1:
        # Mirror the strictly-lower triangle from the computed upper tiles
        # (cheap XLA where/transpose: ~2*N^2*4 B of HBM traffic).
        rows = lax.broadcasted_iota(jnp.int32, (N, N), 0)
        cols = lax.broadcasted_iota(jnp.int32, (N, N), 1)
        up = jnp.where(rows <= cols, up, up.T)
    return up


def metric_ref(x):
    """Pure-JAX reference matching the PyTorch module (full-precision matmul)."""
    xn = x / jnp.sqrt(jnp.sum(x * x, axis=1, keepdims=True))
    gram = jnp.matmul(xn, xn.T, precision=lax.Precision.HIGHEST)
    return jnp.minimum(gram, 1.0)


if __name__ == "__main__":
    key = jax.random.PRNGKey(0)

    # Small shapes consistent with the module (rows = samples, cols = features):
    #   (8, 128)   : single tile, bf16 single-K fast path.
    #   (200, 384) : f32 operands + forced small K tile -> accumulator path,
    #                exercises row padding (200 -> 256).
    #   (384, 256) : multiple triangular output tiles + lower-triangle mirror.
    cases = [
        ((8, 128), dict(), 2e-2),
        ((200, 384), dict(operand_dtype=jnp.float32, tk=128), 1e-2),
        ((384, 256), dict(), 2e-2),
    ]
    for (n, d), kwargs, atol in cases:
        key, sub = jax.random.split(key)
        x = jax.random.normal(sub, (n, d), dtype=jnp.float32)

        out = jax.block_until_ready(metric(x, **kwargs))
        ref = jax.block_until_ready(metric_ref(x))

        assert out.shape == (n, n)
        assert bool(jnp.all(out <= 1.0)), f"clamp failed at {(n, d)}"
        err = float(jnp.max(jnp.abs(out - ref)))
        assert err <= atol, f"mismatch at {(n, d)}: max |err| = {err}"

    print("KERNEL_OK")
</pallas_src>

<mosaic_0001>
module attributes {stable_mosaic.version = 11 : i64} {
  func.func @_prep_kernel(%arg0: i32, %arg1: memref<128x128xf32, #tpu.memory_space<vmem>>, %arg2: memref<128x128xbf16, #tpu.memory_space<vmem>>, %arg3: memref<128x1xf32, #tpu.memory_space<vmem>>) attributes {dimension_semantics = [#tpu.dimension_semantics<parallel>], iteration_bounds = array<i64: 1>, scalar_prefetch = 0 : i64, scratch_operands = 0 : i64, tpu.core_type = #tpu.core_type<tc>, window_params = [{transform_indices = @transform_0, window_bounds = array<i64: 128, 128>}, {transform_indices = @transform_1, window_bounds = array<i64: 128, 128>}, {transform_indices = @transform_2, window_bounds = array<i64: 128, 1>}]} {
    %c0 = arith.constant 0 : index
    %c0_0 = arith.constant 0 : index
    %0 = vector.load %arg1[%c0, %c0_0] : memref<128x128xf32, #tpu.memory_space<vmem>>, vector<128x128xf32>
    %1 = arith.mulf %0, %0 : vector<128x128xf32>
    %cst = arith.constant dense<0.000000e+00> : vector<128xf32>
    %2 = vector.multi_reduction <add>, %1, %cst [1] : vector<128x128xf32> to vector<128xf32>
    %3 = vector.shape_cast %2 : vector<128xf32> to vector<128x1xf32>
    %4 = math.rsqrt %3 : vector<128x1xf32>
    %c0_1 = arith.constant 0 : index
    %c0_2 = arith.constant 0 : index
    %5 = vector.load %arg3[%c0_1, %c0_2] : memref<128x1xf32, #tpu.memory_space<vmem>>, vector<128x1xf32>
    tpu.vector_store %arg3[%c0_1, %c0_2], %4 {strides = array<i32>} : memref<128x1xf32, #tpu.memory_space<vmem>>, vector<128x1xf32>,
    %6 = arith.truncf %0 : vector<128x128xf32> to vector<128x128xbf16>
    %c0_3 = arith.constant 0 : index
    %c0_4 = arith.constant 0 : index
    %7 = vector.load %arg2[%c0_3, %c0_4] : memref<128x128xbf16, #tpu.memory_space<vmem>>, vector<128x128xbf16>
    tpu.vector_store %arg2[%c0_3, %c0_4], %6 {strides = array<i32>} : memref<128x128xbf16, #tpu.memory_space<vmem>>, vector<128x128xbf16>,
    return
  }
  func.func @transform_0(%arg0: i32) -> (i32, i32) {
    %c0_i32 = arith.constant 0 : i32
    %c0_i32_0 = arith.constant 0 : i32
    return %arg0, %c0_i32 : i32, i32
  }
  func.func @transform_1(%arg0: i32) -> (i32, i32) {
    %c0_i32 = arith.constant 0 : i32
    %c0_i32_0 = arith.constant 0 : i32
    return %arg0, %c0_i32 : i32, i32
  }
  func.func @transform_2(%arg0: i32) -> (i32, i32) {
    %c0_i32 = arith.constant 0 : i32
    %c0_i32_0 = arith.constant 0 : i32
    return %arg0, %c0_i32 : i32, i32
  }
}

</mosaic_0001>

<llo_original>
// kernel: tpu_custom_call.1
$region0: #{tpu_custom_call.1}
  #allocation0 [shape = 'u32[]', space=smem, size = 0x4, offset = 0x4, fixed_abs, tag = 'smem constant byte address 0x4 - core index']
  #allocation1 [shape = 'u32[72,128]{1,0:T(1,128)}', space=vmem, size = 0x9000, scoped, tag = 'internal scratch']
  %s0 = inlined_call_operand.hbm [shape: f32[128,128], index: 0, kind: input, shape index: {}]
  %s1 = inlined_call_operand.hbm [shape: bf16[128,128], index: 1, kind: output, shape index: {0}]
  %s2 = inlined_call_operand.vmem [shape: f32[128,1], index: 2, kind: output, shape index: {1}]
  %3 = xla_tuple %s1, %s2
  %s4 = sld [smem:[#allocation0]]
  $region26: #{tpu_custom_call.1} parent=0
    _
  %s6 = ssub.s32 1, %s4
  %s7 = scalar_select 0, %s6, %s4
  $region1: #{tpu_custom_call.1} parent=0
    #allocation2 [shape = 'u8[65536]{0}', space=vmem, size = 0x10000, scoped, tag = 'input window, operand 0, single buffered']
    #allocation3 [shape = 's32[1]{0}', space=sflag, size = 0x4, scoped, tag = 'scoped memory for tpu_custom_call.1']
    #allocation4 [shape = 's32[1]{0}', space=sflag, size = 0x4, scoped, tag = 'scoped memory for tpu_custom_call.1']
    #allocation5 [shape = 'u8[32768]{0}', space=vmem, size = 0x8000, scoped, tag = 'output window, operand 0, single buffered']
    %8 = vsyncpa [#allocation3], 0
    %9 = vsyncpa [#allocation4], 0
    // Predicated region
    $region2: #{tpu_custom_call.1} parent=1 // pred_check
      _
    $region3: #{tpu_custom_call.1} parent=1 // pred_check_branch
      %11 = sbr.rel (0) target = $region5
    $region4: #{tpu_custom_call.1} parent=1 // pred_region
      %13 = vsyncadd [#allocation3], 0
      %s14 = sshll.u32 %s0, 4
      %s15 = int_to_ptr.hbm [resolvable:$true] %s14
      %s16 = sshll.u32 [#allocation2], 4
      %s17 = int_to_ptr.vmem [resolvable:$true] %s16
      %22 = dma.hbm_to_vmem [thread:$0]  %s15, 2048, %s17, [#allocation3], 128, 128, 8
    $region5: #{tpu_custom_call.1} parent=1 // pred_fallthru
      _
    // Predicated region
    $region6: #{tpu_custom_call.1} parent=1 // pred_check
      _
    $region7: #{tpu_custom_call.1} parent=1 // pred_check_branch
      %24 = sbr.rel (0) target = $region9
    $region8: #{tpu_custom_call.1} parent=1 // pred_region
      %26 = dma.done [#allocation3], 2048
    $region9: #{tpu_custom_call.1} parent=1 // pred_fallthru
      _
    %v27 = vld [vmem:[#allocation2] sm:$0xff]
    %v28 = vld [vmem:[#allocation2 + $0x8] sm:$0xff]
    %v29 = vld [vmem:[#allocation2 + $0x10] sm:$0xff]
    %v30 = vld [vmem:[#allocation2 + $0x18] sm:$0xff]
    %v31 = vld [vmem:[#allocation2 + $0x20] sm:$0xff]
    %v32 = vld [vmem:[#allocation2 + $0x28] sm:$0xff]
    %v33 = vld [vmem:[#allocation2 + $0x30] sm:$0xff]
    %v34 = vld [vmem:[#allocation2 + $0x38] sm:$0xff]
    %v35 = vld [vmem:[#allocation2 + $0x40] sm:$0xff]
    %v36 = vld [vmem:[#allocation2 + $0x48] sm:$0xff]
    %v37 = vld [vmem:[#allocation2 + $0x50] sm:$0xff]
    %v38 = vld [vmem:[#allocation2 + $0x58] sm:$0xff]
    %v39 = vld [vmem:[#allocation2 + $0x60] sm:$0xff]
    %v40 = vld [vmem:[#allocation2 + $0x68] sm:$0xff]
    %v41 = vld [vmem:[#allocation2 + $0x70] sm:$0xff]
    %v42 = vld [vmem:[#allocation2 + $0x78] sm:$0xff]
    %v43 = vmul.f32 %v27, %v27
    %v44 = vmul.f32 %v28, %v28
    %v45 = vmul.f32 %v29, %v29
    %v46 = vmul.f32 %v30, %v30
    %v47 = vmul.f32 %v31, %v31
    %v48 = vmul.f32 %v32, %v32
    %v49 = vmul.f32 %v33, %v33
    %v50 = vmul.f32 %v34, %v34
    %v51 = vmul.f32 %v35, %v35
    %v52 = vmul.f32 %v36, %v36
    %v53 = vmul.f32 %v37, %v37
    %v54 = vmul.f32 %v38, %v38
    %v55 = vmul.f32 %v39, %v39
    %v56 = vmul.f32 %v40, %v40
    %v57 = vmul.f32 %v41, %v41
    %v58 = vmul.f32 %v42, %v42
    %59 = vadd.xlane.f32.xlu0 %v43
    %v60 = vpop.xlane.xlu0 %59
    %61 = vadd.xlane.f32.xlu0 %v44
    %v62 = vpop.xlane.xlu0 %61
    %63 = vadd.xlane.f32.xlu0 %v45
    %v64 = vpop.xlane.xlu0 %63
    %65 = vadd.xlane.f32.xlu0 %v46
    %v66 = vpop.xlane.xlu0 %65
    %67 = vadd.xlane.f32.xlu0 %v47
    %v68 = vpop.xlane.xlu0 %67
    %69 = vadd.xlane.f32.xlu0 %v48
    %v70 = vpop.xlane.xlu0 %69
    %71 = vadd.xlane.f32.xlu0 %v49
    %v72 = vpop.xlane.xlu0 %71
    %73 = vadd.xlane.f32.xlu0 %v50
    %v74 = vpop.xlane.xlu0 %73
    %75 = vadd.xlane.f32.xlu0 %v51
    %v76 = vpop.xlane.xlu0 %75
    %77 = vadd.xlane.f32.xlu0 %v52
    %v78 = vpop.xlane.xlu0 %77
    %79 = vadd.xlane.f32.xlu0 %v53
    %v80 = vpop.xlane.xlu0 %79
    %81 = vadd.xlane.f32.xlu0 %v54
    %v82 = vpop.xlane.xlu0 %81
    %83 = vadd.xlane.f32.xlu0 %v55
    %v84 = vpop.xlane.xlu0 %83
    %85 = vadd.xlane.f32.xlu0 %v56
    %v86 = vpop.xlane.xlu0 %85
    %87 = vadd.xlane.f32.xlu0 %v57
    %v88 = vpop.xlane.xlu0 %87
    %89 = vadd.xlane.f32.xlu0 %v58
    %v90 = vpop.xlane.xlu0 %89
    %v91 = vrsqrt.pop %v60
    %v92 = vmul.f32 %v91, %v60
    %v93 = vmul.f32 %v92, %v91
    %v94 = vmul.f32 0.5, %v93
    %v95 = vsub.f32 1.5, %v94
    %v96 = vmul.f32 %v91, %v95
    %vm97 = vweird.f32 %v60
    %vm98 = vweird.f32 %v91
    %vm99 = vmor %vm97, %vm98
    %v100 = vsel %vm99, %v91, %v96
    %v101 = vrsqrt.pop %v62
    %v102 = vmul.f32 %v101, %v62
    %v103 = vmul.f32 %v102, %v101
    %v104 = vmul.f32 0.5, %v103
    %v105 = vsub.f32 1.5, %v104
    %v106 = vmul.f32 %v101, %v105
    %vm107 = vweird.f32 %v62
    %vm108 = vweird.f32 %v101
    %vm109 = vmor %vm107, %vm108
    %v110 = vsel %vm109, %v101, %v106
    %v111 = vrsqrt.pop %v64
    %v112 = vmul.f32 %v111, %v64
    %v113 = vmul.f32 %v112, %v111
    %v114 = vmul.f32 0.5, %v113
    %v115 = vsub.f32 1.5, %v114
    %v116 = vmul.f32 %v111, %v115
    %vm117 = vweird.f32 %v64
    %vm118 = vweird.f32 %v111
    %vm119 = vmor %vm117, %vm118
    %v120 = vsel %vm119, %v111, %v116
    %v121 = vrsqrt.pop %v66
    %v122 = vmul.f32 %v121, %v66
    %v123 = vmul.f32 %v122, %v121
    %v124 = vmul.f32 0.5, %v123
    %v125 = vsub.f32 1.5, %v124
    %v126 = vmul.f32 %v121, %v125
    %vm127 = vweird.f32 %v66
    %vm128 = vweird.f32 %v121
    %vm129 = vmor %vm127, %vm128
    %v130 = vsel %vm129, %v121, %v126
    %v131 = vrsqrt.pop %v68
    %v132 = vmul.f32 %v131, %v68
    %v133 = vmul.f32 %v132, %v131
    %v134 = vmul.f32 0.5, %v133
    %v135 = vsub.f32 1.5, %v134
    %v136 = vmul.f32 %v131, %v135
    %vm137 = vweird.f32 %v68
    %vm138 = vweird.f32 %v131
    %vm139 = vmor %vm137, %vm138
    %v140 = vsel %vm139, %v131, %v136
    %v141 = vrsqrt.pop %v70
    %v142 = vmul.f32 %v141, %v70
    %v143 = vmul.f32 %v142, %v141
    %v144 = vmul.f32 0.5, %v143
    %v145 = vsub.f32 1.5, %v144
    %v146 = vmul.f32 %v141, %v145
    %vm147 = vweird.f32 %v70
    %vm148 = vweird.f32 %v141
    %vm149 = vmor %vm147, %vm148
    %v150 = vsel %vm149, %v141, %v146
    %v151 = vrsqrt.pop %v72
    %v152 = vmul.f32 %v151, %v72
    %v153 = vmul.f32 %v152, %v151
    %v154 = vmul.f32 0.5, %v153
    %v155 = vsub.f32 1.5, %v154
    %v156 = vmul.f32 %v151, %v155
    %vm157 = vweird.f32 %v72
    %vm158 = vweird.f32 %v151
    %vm159 = vmor %vm157, %vm158
    %v160 = vsel %vm159, %v151, %v156
    %v161 = vrsqrt.pop %v74
    %v162 = vmul.f32 %v161, %v74
    %v163 = vmul.f32 %v162, %v161
    %v164 = vmul.f32 0.5, %v163
    %v165 = vsub.f32 1.5, %v164
    %v166 = vmul.f32 %v161, %v165
    %vm167 = vweird.f32 %v74
    %vm168 = vweird.f32 %v161
    %vm169 = vmor %vm167, %vm168
    %v170 = vsel %vm169, %v161, %v166
    %v171 = vrsqrt.pop %v76
    %v172 = vmul.f32 %v171, %v76
    %v173 = vmul.f32 %v172, %v171
    %v174 = vmul.f32 0.5, %v173
    %v175 = vsub.f32 1.5, %v174
    %v176 = vmul.f32 %v171, %v175
    %vm177 = vweird.f32 %v76
    %vm178 = vweird.f32 %v171
    %vm179 = vmor %vm177, %vm178
    %v180 = vsel %vm179, %v171, %v176
    %v181 = vrsqrt.pop %v78
    %v182 = vmul.f32 %v181, %v78
    %v183 = vmul.f32 %v182, %v181
    %v184 = vmul.f32 0.5, %v183
    %v185 = vsub.f32 1.5, %v184
    %v186 = vmul.f32 %v181, %v185
    %vm187 = vweird.f32 %v78
    %vm188 = vweird.f32 %v181
    %vm189 = vmor %vm187, %vm188
    %v190 = vsel %vm189, %v181, %v186
    %v191 = vrsqrt.pop %v80
    %v192 = vmul.f32 %v191, %v80
    %v193 = vmul.f32 %v192, %v191
    %v194 = vmul.f32 0.5, %v193
    %v195 = vsub.f32 1.5, %v194
    %v196 = vmul.f32 %v191, %v195
    %vm197 = vweird.f32 %v80
    %vm198 = vweird.f32 %v191
    %vm199 = vmor %vm197, %vm198
    %v200 = vsel %vm199, %v191, %v196
    %v201 = vrsqrt.pop %v82
    %v202 = vmul.f32 %v201, %v82
    %v203 = vmul.f32 %v202, %v201
    %v204 = vmul.f32 0.5, %v203
    %v205 = vsub.f32 1.5, %v204
    %v206 = vmul.f32 %v201, %v205
    %vm207 = vweird.f32 %v82
    %vm208 = vweird.f32 %v201
    %vm209 = vmor %vm207, %vm208
    %v210 = vsel %vm209, %v201, %v206
    %v211 = vrsqrt.pop %v84
    %v212 = vmul.f32 %v211, %v84
    %v213 = vmul.f32 %v212, %v211
    %v214 = vmul.f32 0.5, %v213
    %v215 = vsub.f32 1.5, %v214
    %v216 = vmul.f32 %v211, %v215
    %vm217 = vweird.f32 %v84
    %vm218 = vweird.f32 %v211
    %vm219 = vmor %vm217, %vm218
    %v220 = vsel %vm219, %v211, %v216
    %v221 = vrsqrt.pop %v86
    %v222 = vmul.f32 %v221, %v86
    %v223 = vmul.f32 %v222, %v221
    %v224 = vmul.f32 0.5, %v223
    %v225 = vsub.f32 1.5, %v224
    %v226 = vmul.f32 %v221, %v225
    %vm227 = vweird.f32 %v86
    %vm228 = vweird.f32 %v221
    %vm229 = vmor %vm227, %vm228
    %v230 = vsel %vm229, %v221, %v226
    %v231 = vrsqrt.pop %v88
    %v232 = vmul.f32 %v231, %v88
    %v233 = vmul.f32 %v232, %v231
    %v234 = vmul.f32 0.5, %v233
    %v235 = vsub.f32 1.5, %v234
    %v236 = vmul.f32 %v231, %v235
    %vm237 = vweird.f32 %v88
    %vm238 = vweird.f32 %v231
    %vm239 = vmor %vm237, %vm238
    %v240 = vsel %vm239, %v231, %v236
    %v241 = vrsqrt.pop %v90
    %v242 = vmul.f32 %v241, %v90
    %v243 = vmul.f32 %v242, %v241
    %v244 = vmul.f32 0.5, %v243
    %v245 = vsub.f32 1.5, %v244
    %v246 = vmul.f32 %v241, %v245
    %vm247 = vweird.f32 %v90
    %vm248 = vweird.f32 %v241
    %vm249 = vmor %vm247, %vm248
    %v250 = vsel %vm249, %v241, %v246
    %vm251 = vcmask 7168
    %252 = vst.msk [vmem:[%s2] sm:$0xff] %vm251, %v100
    %253 = vst.msk [vmem:[%s2 + $0x8] sm:$0xff] %vm251, %v110
    %254 = vst.msk [vmem:[%s2 + $0x10] sm:$0xff] %vm251, %v120
    %255 = vst.msk [vmem:[%s2 + $0x18] sm:$0xff] %vm251, %v130
    %256 = vst.msk [vmem:[%s2 + $0x20] sm:$0xff] %vm251, %v140
    %257 = vst.msk [vmem:[%s2 + $0x28] sm:$0xff] %vm251, %v150
    %258 = vst.msk [vmem:[%s2 + $0x30] sm:$0xff] %vm251, %v160
    %259 = vst.msk [vmem:[%s2 + $0x38] sm:$0xff] %vm251, %v170
    %260 = vst.msk [vmem:[%s2 + $0x40] sm:$0xff] %vm251, %v180
    %261 = vst.msk [vmem:[%s2 + $0x48] sm:$0xff] %vm251, %v190
    %262 = vst.msk [vmem:[%s2 + $0x50] sm:$0xff] %vm251, %v200
    %263 = vst.msk [vmem:[%s2 + $0x58] sm:$0xff] %vm251, %v210
    %264 = vst.msk [vmem:[%s2 + $0x60] sm:$0xff] %vm251, %v220
    %265 = vst.msk [vmem:[%s2 + $0x68] sm:$0xff] %vm251, %v230
    %266 = vst.msk [vmem:[%s2 + $0x70] sm:$0xff] %vm251, %v240
    %267 = vst.msk [vmem:[%s2 + $0x78] sm:$0xff] %vm251, %v250
    %v268 = vpack.c.bf16 %v27, %v27
    %v269 = vpack.c.bf16 %v28, %v28
    %v270 = vpack.c.bf16 %v29, %v29
    %v271 = vpack.c.bf16 %v30, %v30
    %v272 = vpack.c.bf16 %v31, %v31
    %v273 = vpack.c.bf16 %v32, %v32
    %v274 = vpack.c.bf16 %v33, %v33
    %v275 = vpack.c.bf16 %v34, %v34
    %v276 = vpack.c.bf16 %v35, %v35
    %v277 = vpack.c.bf16 %v36, %v36
    %v278 = vpack.c.bf16 %v37, %v37
    %v279 = vpack.c.bf16 %v38, %v38
    %v280 = vpack.c.bf16 %v39, %v39
    %v281 = vpack.c.bf16 %v40, %v40
    %v282 = vpack.c.bf16 %v41, %v41
    %v283 = vpack.c.bf16 %v42, %v42
    %284 = vst [vmem:[#allocation5] sm:$0xf] %v268
    %285 = vst [vmem:[#allocation5 + $0x4] sm:$0xf] %v269
    %286 = vst [vmem:[#allocation5 + $0x8] sm:$0xf] %v270
    %287 = vst [vmem:[#allocation5 + $0xc] sm:$0xf] %v271
    %288 = vst [vmem:[#allocation5 + $0x10] sm:$0xf] %v272
    %289 = vst [vmem:[#allocation5 + $0x14] sm:$0xf] %v273
    %290 = vst [vmem:[#allocation5 + $0x18] sm:$0xf] %v274
    %291 = vst [vmem:[#allocation5 + $0x1c] sm:$0xf] %v275
    %292 = vst [vmem:[#allocation5 + $0x20] sm:$0xf] %v276
    %293 = vst [vmem:[#allocation5 + $0x24] sm:$0xf] %v277
    %294 = vst [vmem:[#allocation5 + $0x28] sm:$0xf] %v278
    %295 = vst [vmem:[#allocation5 + $0x2c] sm:$0xf] %v279
    %296 = vst [vmem:[#allocation5 + $0x30] sm:$0xf] %v280
    %297 = vst [vmem:[#allocation5 + $0x34] sm:$0xf] %v281
    %298 = vst [vmem:[#allocation5 + $0x38] sm:$0xf] %v282
    %299 = vst [vmem:[#allocation5 + $0x3c] sm:$0xf] %v283
    // Predicated region
    $region10: #{tpu_custom_call.1} parent=1 // pred_check
      _
    $region11: #{tpu_custom_call.1} parent=1 // pred_check_branch
      %301 = sbr.rel (0) target = $region13
    $region12: #{tpu_custom_call.1} parent=1 // pred_region
      %303 = vsyncadd [#allocation4], 0
      %s304 = sshll.u32 [#allocation5], 4
      %s305 = int_to_ptr.vmem [resolvable:$true] %s304
      %s306 = sshll.u32 %s1, 4
      %s307 = int_to_ptr.hbm [resolvable:$true] %s306
      %312 = dma.vmem_to_hbm [thread:$0]  %s305, 1024, %s307, [#allocation4], 64, 64, 4
    $region13: #{tpu_custom_call.1} parent=1 // pred_fallthru
      _
    // Predicated region
    $region14: #{tpu_custom_call.1} parent=1 // pred_check
      _
    $region15: #{tpu_custom_call.1} parent=1 // pred_check_branch
      %314 = sbr.rel (0) target = $region17
    $region16: #{tpu_custom_call.1} parent=1 // pred_region
      _
    $region17: #{tpu_custom_call.1} parent=1 // pred_fallthru
      _
    // Predicated region
    $region18: #{tpu_custom_call.1} parent=1 // pred_check
      _
    $region19: #{tpu_custom_call.1} parent=1 // pred_check_branch
      %316 = sbr.rel (0) target = $region21
    $region20: #{tpu_custom_call.1} parent=1 // pred_region
      %318 = dma.done [#allocation4], 1024
    $region21: #{tpu_custom_call.1} parent=1 // pred_fallthru
      _
    // Predicated region
    $region22: #{tpu_custom_call.1} parent=1 // pred_check
      _
    $region23: #{tpu_custom_call.1} parent=1 // pred_check_branch
      %320 = sbr.rel (0) target = $region25
    $region24: #{tpu_custom_call.1} parent=1 // pred_region
      _
    $region25: #{tpu_custom_call.1} parent=1 // pred_fallthru
      _
    %321 = vsyncpa [#allocation3], 1
    %322 = vsyncpa [#allocation4], 1

</llo_original>
